<compile_context>
chip_gen: v5e
topology: v5e:2x2
jax: 0.10.0
libtpu: 0.0.40
codegen_flags: <defaults>
</compile_context>

<pallas_src>
import jax
import jax.numpy as jnp
from jax.experimental import pallas as pl
from jax.experimental.pallas import tpu as pltpu


def _ent_init_alarm_feat_copy_kernel(feat_ref, out_ref, copy_sem):
    # Single HBM->HBM DMA of the whole node-feature matrix.  No VMEM staging,
    # no per-tile loads/stores, no pipeline steps.
    cp = pltpu.make_async_copy(feat_ref, out_ref, copy_sem)
    cp.start()
    cp.wait()


@jax.jit
def ent_init_alarm_feat_pallas(alarm_kpi_feat):
    """Pallas kernel: materialize a fresh copy of the node features via one DMA."""
    N, F = alarm_kpi_feat.shape
    return pl.pallas_call(
        _ent_init_alarm_feat_copy_kernel,
        out_shape=jax.ShapeDtypeStruct((N, F), alarm_kpi_feat.dtype),
        in_specs=[pl.BlockSpec(memory_space=pl.ANY)],
        out_specs=pl.BlockSpec(memory_space=pl.ANY),
        scratch_shapes=[pltpu.SemaphoreType.DMA(())],
    )(alarm_kpi_feat)


def ent_init_alarm_feat(alarm_kpi_feat, materialize=False):
    """Equivalent of EntInitAlarmFeat.forward.

    materialize=False (default): zero-cost pass-through, exactly like the
    PyTorch module which returns a reference to g.ndata['alarm_kpi_feat'].
    materialize=True: produce a physically distinct output buffer with the
    single-DMA Pallas kernel (use only if downstream mutates the result).
    """
    if not materialize:
        return alarm_kpi_feat
    return ent_init_alarm_feat_pallas(alarm_kpi_feat)


if __name__ == "__main__":
    key = jax.random.PRNGKey(0)

    # Small synthetic graph: 16 entities (nodes), 256-dim alarm/KPI feature.
    N, F = 16, 256
    alarm_kpi_feat = jax.random.uniform(key, (N, F), dtype=jnp.float32)

    # Stand-in for the DGL graph container: g.ndata['alarm_kpi_feat'] is just a
    # host-side dict lookup, not a device op.
    g_ndata = {"alarm_kpi_feat": alarm_kpi_feat}

    # Zero-cost faithful path (what the PyTorch module actually does).
    passthrough = ent_init_alarm_feat(g_ndata["alarm_kpi_feat"], materialize=False)

    # Pallas-kernel path (single HBM->HBM DMA producing a distinct buffer).
    out = ent_init_alarm_feat(g_ndata["alarm_kpi_feat"], materialize=True)
    out = jax.block_until_ready(out)

    ref = g_ndata["alarm_kpi_feat"]
    assert passthrough is ref
    assert out.shape == ref.shape and out.dtype == ref.dtype
    assert bool(jnp.array_equal(out, ref)), "mismatch vs reference"

    print("KERNEL_OK")
</pallas_src>

<mosaic_0001>
module attributes {stable_mosaic.version = 11 : i64} {
  func.func @_ent_init_alarm_feat_copy_kernel(%arg0: memref<16x256xf32, #tpu.memory_space<any>>, %arg1: memref<16x256xf32, #tpu.memory_space<any>>, %arg2: memref<!tpu.dma_semaphore, #tpu.memory_space<semaphore_mem>>) attributes {dimension_semantics = [], scalar_prefetch = 0 : i64, scratch_operands = 1 : i64, tpu.core_type = #tpu.core_type<tc>} {
    tpu.enqueue_dma source(%arg0 : memref<16x256xf32, #tpu.memory_space<any>>) target(%arg1 : memref<16x256xf32, #tpu.memory_space<any>>) target_semaphore(%arg2 : memref<!tpu.dma_semaphore, #tpu.memory_space<semaphore_mem>>)
    tpu.wait_dma2 semaphore(%arg2 : memref<!tpu.dma_semaphore, #tpu.memory_space<semaphore_mem>>) src(%arg0 : memref<16x256xf32, #tpu.memory_space<any>>) dst(%arg1 : memref<16x256xf32, #tpu.memory_space<any>>)
    return
  }
}

</mosaic_0001>

<llo_original>
// kernel: ent_init_alarm_feat_pallas.1
$region0: #{ent_init_alarm_feat_pallas.1}
  #allocation0 [shape = 'u32[]', space=smem, size = 0x4, offset = 0x4, fixed_abs, tag = 'smem constant byte address 0x4 - core index']
  #allocation1 [shape = 'u32[72,128]{1,0:T(1,128)}', space=vmem, size = 0x9000, scoped, tag = 'internal scratch']
  #allocation2 [shape = 's32[1]{0}', space=sflag, size = 0x4, scoped, tag = 'scratch operand']
  #allocation3 [shape = 's32[]', space=sflag, size = 0x4, offset = 0, fixed_abs, tag = 'sflag constant byte address 0x0 - dummy sync flag']
  #allocation4 [shape = 'u32[0]{0}', space=smem, size = 0, offset = 0, fixed_abs, tag = 'smem constant byte address 0x0 - null']
  %s0 = inlined_call_operand.hbm [shape: f32[16,256], index: 0, kind: input, shape index: {}]
  %s1 = inlined_call_operand.hbm [shape: f32[16,256], index: 1, kind: output, shape index: {}]
  %s2 = sld [smem:[#allocation0]]
  $region2: #{ent_init_alarm_feat_pallas.1} parent=0
    _
  %s4 = ssub.s32 1, %s2
  %s5 = scalar_select 0, %s4, %s2
  %s7 = sshll.u32 1, 14
  %s8 = sxor.u32 4294967295, %s7
  %s10 = sshll.u32 %s0, 4
  %s11 = int_to_ptr.hbm [resolvable:$true] %s10
  %s12 = sshll.u32 %s1, 4
  %s13 = int_to_ptr.hbm [resolvable:$true] %s12
  %16 = dma.general %s11, 512, %s13, [#allocation2], [#allocation3], [#allocation4], 0, 0
  %s17 = smul.u32 8, 2
  %s18 = smul.u32 %s17, 2
  %s19 = sshll.u32 %s18, 4
  %20 = dma.done [#allocation2], %s19
  %21 = vsyncmov [#allocation2]
  %s22 = vpop.sfrf %21
  %p23 = scmp.eq.s32.totalorder %s22, 0
  %p24 = pneg %p23
  %26 = shalt.err (%p24)

</llo_original>
